<compile_context>
chip_gen: v5e
topology: v5e:2x2
jax: 0.10.0
libtpu: 0.0.40
codegen_flags: <defaults>
</compile_context>

<pallas_src>
import jax
import jax.numpy as jnp
from jax import lax
from jax.experimental import pallas as pl
from jax.experimental.pallas import tpu as pltpu


def _round_up(x: int, m: int) -> int:
    return ((x + m - 1) // m) * m


def _pack_multiple(dtype) -> int:
    """Sublane pack multiple (rows per vreg sublane group) for a dtype."""
    size = jnp.dtype(dtype).itemsize
    if size >= 4:
        return 8
    if size == 2:
        return 16
    return 32


def _vmem_budget_bytes() -> int:
    """Per-core VMEM budget with headroom (conservative default = v7x)."""
    try:
        cap = int(pltpu.get_tpu_info().vmem_capacity_bytes)
    except Exception:  # no chip / older runtime
        cap = 64 * 1024 * 1024
    return (cap * 3) // 4


# ---------------------------------------------------------------------------
# Path A: VMEM-resident table, one-hot MXU gather fused with the add.
# ---------------------------------------------------------------------------
def _eagle_onehot_kernel(ids_ref, hs_ref, emb_ref, out_ref):
    # ids_ref: (TB, 1) int32   hs_ref: (TB, H)   emb_ref: (V, H)   out_ref: (TB, H)
    tb = out_ref.shape[0]
    v = emb_ref.shape[0]
    ids = ids_ref[...]                                          # (TB, 1)
    iota = lax.broadcasted_iota(jnp.int32, (tb, v), 1)          # (TB, V)
    one_hot = (iota == ids).astype(emb_ref.dtype)               # exact row selector
    rows = jnp.dot(one_hot, emb_ref[...],
                   preferred_element_type=jnp.float32)          # (TB, H) f32
    out_ref[...] = (rows + hs_ref[...].astype(jnp.float32)).astype(out_ref.dtype)


# ---------------------------------------------------------------------------
# Path B: table stays in HBM; per-row DMA gather into VMEM scratch, fused add.
# ---------------------------------------------------------------------------
def _eagle_hbm_gather_kernel(ids_ref, hs_ref, emb_hbm, out_ref, row_buf, sems):
    # ids_ref: (Tp,) int32 in SMEM (scalar prefetch)
    # hs_ref : (TB, H) VMEM block     emb_hbm: (V, H) HBM ref (pl.ANY)
    # row_buf: (TB, H) VMEM scratch   sems   : (TB,) DMA semaphores
    tb = out_ref.shape[0]
    base = pl.program_id(0) * tb

    def start_one(t, c):
        tok = ids_ref[base + t]
        pltpu.make_async_copy(emb_hbm.at[pl.ds(tok, 1), :],
                              row_buf.at[pl.ds(t, 1), :],
                              sems.at[t]).start()
        return c

    lax.fori_loop(0, tb, start_one, 0, unroll=8)

    def wait_one(t, c):
        pltpu.make_async_copy(emb_hbm.at[pl.ds(0, 1), :],
                              row_buf.at[pl.ds(t, 1), :],
                              sems.at[t]).wait()
        return c

    lax.fori_loop(0, tb, wait_one, 0, unroll=8)

    out_ref[...] = (row_buf[...].astype(jnp.float32)
                    + hs_ref[...].astype(jnp.float32)).astype(out_ref.dtype)


# ---------------------------------------------------------------------------
# Wrapper
# ---------------------------------------------------------------------------
def dummy_eagle_forward(input_ids, hidden_states, positions, embedding_table,
                        *, block_tokens=256, onehot_vocab_limit=2048,
                        table_vmem_budget_bytes=8 * 1024 * 1024,
                        alias_hidden_states=False):
    """out[t, :] = hidden_states[t, :] + embedding_table[input_ids[t], :]"""
    del positions  # unused by the reference forward
    T, H = hidden_states.shape
    V, He = embedding_table.shape
    assert He == H

    input_ids = input_ids.astype(jnp.int32)      # scalar-prefetch / index dtype
    out_dtype = hidden_states.dtype
    hs_bytes = jnp.dtype(out_dtype).itemsize
    tb_bytes = jnp.dtype(embedding_table.dtype).itemsize
    table_bytes = V * H * tb_bytes

    pack = _pack_multiple(out_dtype)
    TB = max(pack, min(_round_up(block_tokens, pack), _round_up(T, pack)))
    Tp = _round_up(T, TB)
    if Tp != T:
        hidden_states = jnp.pad(hidden_states, ((0, Tp - T), (0, 0)))
        input_ids = jnp.pad(input_ids, (0, Tp - T))   # pad with a valid index (0)

    budget = _vmem_budget_bytes()

    # Working-set estimates (hs + out double-buffered; table single-buffered).
    need_onehot = (table_bytes
                   + 2 * 2 * TB * H * hs_bytes            # hs + out blocks
                   + 2 * TB * 128 * 4                     # lane-padded ids block
                   + TB * (V + H) * 4)                    # one-hot + f32 temporaries
    need_hbm = (2 * 2 * TB * H * hs_bytes
                + TB * H * tb_bytes                       # row_buf scratch
                + TB * H * 4)                             # f32 add temporary

    use_onehot = (V <= onehot_vocab_limit
                  and table_bytes <= table_vmem_budget_bytes
                  and need_onehot <= budget)

    grid = (Tp // TB,)
    io_alias = {1: 0} if alias_hidden_states else {}

    if use_onehot:
        vmem_limit = int(min(budget, max(32 * 1024 * 1024, 2 * need_onehot)))
        ids_2d = input_ids.reshape(Tp, 1)

        def run(table_spec):
            return pl.pallas_call(
                _eagle_onehot_kernel,
                out_shape=jax.ShapeDtypeStruct((Tp, H), out_dtype),
                grid=grid,
                in_specs=[
                    pl.BlockSpec((TB, 1), lambda i: (i, 0)),
                    pl.BlockSpec((TB, H), lambda i: (i, 0)),
                    table_spec,
                ],
                out_specs=pl.BlockSpec((TB, H), lambda i: (i, 0)),
                compiler_params=pltpu.CompilerParams(
                    dimension_semantics=("parallel",),
                    vmem_limit_bytes=vmem_limit),
                input_output_aliases=io_alias,
            )(ids_2d, hidden_states, embedding_table)

        try:
            # Constant-index_map table block: single-buffer it (one VMEM copy).
            out = run(pl.BlockSpec((V, H), lambda i: (0, 0),
                                   pipeline_mode=pl.Buffered(1)))
        except Exception:
            # Fallback if this jax version rejects single-buffering.
            out = run(pl.BlockSpec((V, H), lambda i: (0, 0)))
    else:
        vmem_limit = int(min(budget, max(32 * 1024 * 1024, 2 * need_hbm)))
        grid_spec = pltpu.PrefetchScalarGridSpec(
            num_scalar_prefetch=1,                 # input_ids -> SMEM
            grid=grid,
            in_specs=[
                pl.BlockSpec((TB, H), lambda i, ids: (i, 0)),
                pl.BlockSpec(memory_space=pl.ANY),  # table stays in HBM
            ],
            out_specs=pl.BlockSpec((TB, H), lambda i, ids: (i, 0)),
            scratch_shapes=[
                pltpu.VMEM((TB, H), embedding_table.dtype),
                pltpu.SemaphoreType.DMA((TB,)),
            ],
        )
        out = pl.pallas_call(
            _eagle_hbm_gather_kernel,
            out_shape=jax.ShapeDtypeStruct((Tp, H), out_dtype),
            grid_spec=grid_spec,
            compiler_params=pltpu.CompilerParams(
                dimension_semantics=("parallel",),
                vmem_limit_bytes=vmem_limit),
        )(input_ids, hidden_states, embedding_table)

    return out[:T] if Tp != T else out


if __name__ == "__main__":
    key = jax.random.PRNGKey(0)
    k1, k2, k3, k4, k5, k6, k7 = jax.random.split(key, 7)

    # Case 1: small single-block shapes -> resident-table one-hot MXU path.
    T, H, V = 8, 128, 32
    ids = jax.random.randint(k1, (T,), 0, V, dtype=jnp.int32)
    hs = jax.random.normal(k2, (T, H), dtype=jnp.float32)
    pos = jnp.arange(T, dtype=jnp.int32)
    emb = jax.random.normal(k3, (V, H), dtype=jnp.float32)

    out = jax.block_until_ready(dummy_eagle_forward(ids, hs, pos, emb))
    ref = hs + jnp.take(emb, ids, axis=0)
    assert out.shape == (T, H) and out.dtype == hs.dtype
    assert jnp.allclose(out, ref, atol=1e-5, rtol=1e-5)

    # Case 2: multi-block grid with a padded partial last block (one-hot path).
    T2 = 40
    ids2 = jax.random.randint(k4, (T2,), 0, V, dtype=jnp.int32)
    hs2 = jax.random.normal(k5, (T2, H), dtype=jnp.float32)
    pos2 = jnp.arange(T2, dtype=jnp.int32)
    out2 = jax.block_until_ready(
        dummy_eagle_forward(ids2, hs2, pos2, emb, block_tokens=16))
    ref2 = hs2 + jnp.take(emb, ids2, axis=0)
    assert out2.shape == (T2, H)
    assert jnp.allclose(out2, ref2, atol=1e-5, rtol=1e-5)

    # Case 3: force the HBM-resident per-row DMA-gather path (large-vocab path).
    T3, V3 = 24, 64
    ids3 = jax.random.randint(k6, (T3,), 0, V3, dtype=jnp.int32)
    hs3 = jax.random.normal(k7, (T3, H), dtype=jnp.float32)
    pos3 = jnp.arange(T3, dtype=jnp.int32)
    emb3 = jax.random.normal(k3, (V3, H), dtype=jnp.float32)
    out3 = jax.block_until_ready(
        dummy_eagle_forward(ids3, hs3, pos3, emb3,
                            block_tokens=8, onehot_vocab_limit=0))
    ref3 = hs3 + jnp.take(emb3, ids3, axis=0)
    assert out3.shape == (T3, H)
    assert jnp.allclose(out3, ref3, atol=1e-5, rtol=1e-5)

    print("KERNEL_OK")
</pallas_src>

<mosaic_0001>
module attributes {stable_mosaic.version = 11 : i64} {
  func.func @_eagle_onehot_kernel(%arg0: i32, %arg1: memref<8x1xi32, #tpu.memory_space<vmem>>, %arg2: memref<8x128xf32, #tpu.memory_space<vmem>>, %arg3: memref<32x128xf32, #tpu.memory_space<vmem>>, %arg4: memref<8x128xf32, #tpu.memory_space<vmem>>) attributes {dimension_semantics = [#tpu.dimension_semantics<parallel>], iteration_bounds = array<i64: 1>, scalar_prefetch = 0 : i64, scratch_operands = 0 : i64, tpu.core_type = #tpu.core_type<tc>, window_params = [{transform_indices = @transform_0, window_bounds = array<i64: 8, 1>}, {transform_indices = @transform_1, window_bounds = array<i64: 8, 128>}, {pipeline_mode = #tpu.pipeline_mode<synchronous>, transform_indices = @transform_2, window_bounds = array<i64: 32, 128>}, {transform_indices = @transform_3, window_bounds = array<i64: 8, 128>}]} {
    %c0 = arith.constant 0 : index
    %c0_0 = arith.constant 0 : index
    %0 = vector.load %arg1[%c0, %c0_0] : memref<8x1xi32, #tpu.memory_space<vmem>>, vector<8x1xi32>
    %1 = tpu.iota {dimensions = array<i32: 1>} : vector<8x32xi32>
    %2 = vector.broadcast %0 : vector<8x1xi32> to vector<8x32xi32>
    %3 = arith.cmpi eq, %1, %2 : vector<8x32xi32>
    %4 = arith.extui %3 : vector<8x32xi1> to vector<8x32xi32>
    %5 = arith.sitofp %4 : vector<8x32xi32> to vector<8x32xf32>
    %c0_1 = arith.constant 0 : index
    %c0_2 = arith.constant 0 : index
    %6 = vector.load %arg3[%c0_1, %c0_2] : memref<32x128xf32, #tpu.memory_space<vmem>>, vector<32x128xf32>
    %cst = arith.constant dense<0.000000e+00> : vector<8x128xf32>
    %7 = tpu.matmul %5, %6, %cst {dimension_numbers = #tpu.dot_dimension_numbers<[1], [0], [0], [1], [0, 0, 1, 1], [], []>} : vector<8x32xf32>, vector<32x128xf32>, vector<8x128xf32> -> vector<8x128xf32>
    %c0_3 = arith.constant 0 : index
    %c0_4 = arith.constant 0 : index
    %8 = vector.load %arg2[%c0_3, %c0_4] : memref<8x128xf32, #tpu.memory_space<vmem>>, vector<8x128xf32>
    %9 = arith.addf %7, %8 : vector<8x128xf32>
    %c0_5 = arith.constant 0 : index
    %c0_6 = arith.constant 0 : index
    %10 = vector.load %arg4[%c0_5, %c0_6] : memref<8x128xf32, #tpu.memory_space<vmem>>, vector<8x128xf32>
    tpu.vector_store %arg4[%c0_5, %c0_6], %9 {strides = array<i32>} : memref<8x128xf32, #tpu.memory_space<vmem>>, vector<8x128xf32>,
    return
  }
  func.func @transform_0(%arg0: i32) -> (i32, i32) {
    %c0_i32 = arith.constant 0 : i32
    %c0_i32_0 = arith.constant 0 : i32
    return %arg0, %c0_i32 : i32, i32
  }
  func.func @transform_1(%arg0: i32) -> (i32, i32) {
    %c0_i32 = arith.constant 0 : i32
    %c0_i32_0 = arith.constant 0 : i32
    return %arg0, %c0_i32 : i32, i32
  }
  func.func @transform_2(%arg0: i32) -> (i32, i32) {
    %c0_i32 = arith.constant 0 : i32
    %c0_i32_0 = arith.constant 0 : i32
    %c0_i32_1 = arith.constant 0 : i32
    return %c0_i32, %c0_i32_0 : i32, i32
  }
  func.func @transform_3(%arg0: i32) -> (i32, i32) {
    %c0_i32 = arith.constant 0 : i32
    %c0_i32_0 = arith.constant 0 : i32
    return %arg0, %c0_i32 : i32, i32
  }
}

module attributes {stable_mosaic.version = 11 : i64} {
  func.func @_eagle_onehot_kernel(%arg0: i32, %arg1: memref<8x1xi32, #tpu.memory_space<vmem>>, %arg2: memref<8x128xf32, #tpu.memory_space<vmem>>, %arg3: memref<32x128xf32, #tpu.memory_space<vmem>>, %arg4: memref<8x128xf32, #tpu.memory_space<vmem>>) attributes {dimension_semantics = [#tpu.dimension_semantics<parallel>], iteration_bounds = array<i64: 1>, scalar_prefetch = 0 : i64, scratch_operands = 0 : i64, tpu.core_type = #tpu.core_type<tc>, window_params = [{transform_indices = @transform_0, window_bounds = array<i64: 8, 1>}, {transform_indices = @transform_1, window_bounds = array<i64: 8, 128>}, {pipeline_mode = #tpu.pipeline_mode<synchronous>, transform_indices = @transform_2, window_bounds = array<i64: 32, 128>}, {transform_indices = @transform_3, window_bounds = array<i64: 8, 128>}]} {
    %c0 = arith.constant 0 : index
    %c0_0 = arith.constant 0 : index
    %0 = vector.load %arg1[%c0, %c0_0] : memref<8x1xi32, #tpu.memory_space<vmem>>, vector<8x1xi32>
    %1 = tpu.iota {dimensions = array<i32: 1>} : vector<8x32xi32>
    %2 = vector.broadcast %0 : vector<8x1xi32> to vector<8x32xi32>
    %3 = arith.cmpi eq, %1, %2 : vector<8x32xi32>
    %4 = arith.extui %3 : vector<8x32xi1> to vector<8x32xi32>
    %5 = arith.sitofp %4 : vector<8x32xi32> to vector<8x32xf32>
    %c0_1 = arith.constant 0 : index
    %c0_2 = arith.constant 0 : index
    %6 = vector.load %arg3[%c0_1, %c0_2] : memref<32x128xf32, #tpu.memory_space<vmem>>, vector<32x128xf32>
    %cst = arith.constant dense<0.000000e+00> : vector<8x128xf32>
    %7 = tpu.matmul %5, %6, %cst {dimension_numbers = #tpu.dot_dimension_numbers<[1], [0], [0], [1], [0, 0, 1, 1], [], []>} : vector<8x32xf32>, vector<32x128xf32>, vector<8x128xf32> -> vector<8x128xf32>
    %c0_3 = arith.constant 0 : index
    %c0_4 = arith.constant 0 : index
    %8 = vector.load %arg2[%c0_3, %c0_4] : memref<8x128xf32, #tpu.memory_space<vmem>>, vector<8x128xf32>
    %9 = arith.addf %7, %8 : vector<8x128xf32>
    %c0_5 = arith.constant 0 : index
    %c0_6 = arith.constant 0 : index
    %10 = vector.load %arg4[%c0_5, %c0_6] : memref<8x128xf32, #tpu.memory_space<vmem>>, vector<8x128xf32>
    tpu.vector_store %arg4[%c0_5, %c0_6], %9 {strides = array<i32>} : memref<8x128xf32, #tpu.memory_space<vmem>>, vector<8x128xf32>,
    return
  }
  func.func @transform_0(%arg0: i32) -> (i32, i32) {
    %c0_i32 = arith.constant 0 : i32
    %c0_i32_0 = arith.constant 0 : i32
    return %arg0, %c0_i32 : i32, i32
  }
  func.func @transform_1(%arg0: i32) -> (i32, i32) {
    %c0_i32 = arith.constant 0 : i32
    %c0_i32_0 = arith.constant 0 : i32
    return %arg0, %c0_i32 : i32, i32
  }
  func.func @transform_2(%arg0: i32) -> (i32, i32) {
    %c0_i32 = arith.constant 0 : i32
    %c0_i32_0 = arith.constant 0 : i32
    %c0_i32_1 = arith.constant 0 : i32
    return %c0_i32, %c0_i32_0 : i32, i32
  }
  func.func @transform_3(%arg0: i32) -> (i32, i32) {
    %c0_i32 = arith.constant 0 : i32
    %c0_i32_0 = arith.constant 0 : i32
    return %arg0, %c0_i32 : i32, i32
  }
}

</mosaic_0001>

<llo_original>
// kernel: tpu_custom_call.1
$region0: #{tpu_custom_call.1}
  #allocation0 [shape = 'u32[]', space=smem, size = 0x4, offset = 0x4, fixed_abs, tag = 'smem constant byte address 0x4 - core index']
  #allocation1 [shape = 'u32[72,128]{1,0:T(1,128)}', space=vmem, size = 0x9000, scoped, tag = 'internal scratch']
  %s0 = inlined_call_operand.vmem [shape: s32[8,1], index: 0, kind: input, shape index: {}]
  %s1 = inlined_call_operand.vmem [shape: f32[8,128], index: 1, kind: input, shape index: {}]
  %s2 = inlined_call_operand.hbm [shape: f32[32,128], index: 2, kind: input, shape index: {}]
  %s3 = inlined_call_operand.hbm [shape: f32[8,128], index: 3, kind: output, shape index: {}]
  %s4 = sld [smem:[#allocation0]]
  $region26: #{tpu_custom_call.1} parent=0
    _
  %s6 = ssub.s32 1, %s4
  %s7 = scalar_select 0, %s6, %s4
  $region1: #{tpu_custom_call.1} parent=0
    #allocation2 [shape = 'u8[16384]{0}', space=vmem, size = 0x4000, scoped, tag = 'input window, operand 2, single buffered']
    #allocation3 [shape = 's32[1]{0}', space=sflag, size = 0x4, scoped, tag = 'scoped memory for tpu_custom_call.1']
    #allocation4 [shape = 's32[1]{0}', space=sflag, size = 0x4, scoped, tag = 'scoped memory for tpu_custom_call.1']
    #allocation5 [shape = 'u8[4096]{0}', space=vmem, size = 0x1000, scoped, tag = 'output window, operand 0, single buffered']
    %8 = vsyncpa [#allocation3], 0
    %9 = vsyncpa [#allocation4], 0
    // Predicated region
    $region2: #{tpu_custom_call.1} parent=1 // pred_check
      _
    $region3: #{tpu_custom_call.1} parent=1 // pred_check_branch
      %11 = sbr.rel (0) target = $region5
    $region4: #{tpu_custom_call.1} parent=1 // pred_region
      _
    $region5: #{tpu_custom_call.1} parent=1 // pred_fallthru
      _
    // Predicated region
    $region6: #{tpu_custom_call.1} parent=1 // pred_check
      _
    $region7: #{tpu_custom_call.1} parent=1 // pred_check_branch
      %13 = sbr.rel (0) target = $region9
    $region8: #{tpu_custom_call.1} parent=1 // pred_region
      _
    $region9: #{tpu_custom_call.1} parent=1 // pred_fallthru
      _
    // Predicated region
    $region10: #{tpu_custom_call.1} parent=1 // pred_check
      _
    $region11: #{tpu_custom_call.1} parent=1 // pred_check_branch
      %15 = sbr.rel (0) target = $region13
    $region12: #{tpu_custom_call.1} parent=1 // pred_region
      %17 = vsyncadd [#allocation3], 0
      %s18 = sshll.u32 %s2, 4
      %s19 = int_to_ptr.hbm [resolvable:$true] %s18
      %s20 = sshll.u32 [#allocation2], 4
      %s21 = int_to_ptr.vmem [resolvable:$true] %s20
      %26 = dma.hbm_to_vmem [thread:$0]  %s19, 512, %s21, [#allocation3], 128, 128, 8
    $region13: #{tpu_custom_call.1} parent=1 // pred_fallthru
      _
    // Predicated region
    $region14: #{tpu_custom_call.1} parent=1 // pred_check
      _
    $region15: #{tpu_custom_call.1} parent=1 // pred_check_branch
      %28 = sbr.rel (0) target = $region17
    $region16: #{tpu_custom_call.1} parent=1 // pred_region
      %30 = dma.done [#allocation3], 512
    $region17: #{tpu_custom_call.1} parent=1 // pred_fallthru
      _
    %v31 = vld [vmem:[%s0] sm:$0xff]
    %v32 = vlaneseq
    %v33 = vand.u32 %v32, 127
    %34 = vset.pattern.permute.xlu0 0
    %35 = vperm.xlu0 %34, %v31
    %v36 = vpop.permute.xlu0 %35
    %vm37 = vcmp.eq.s32.totalorder %v33, %v36
    %v38 = vsel %vm37, 1, 0
    %v39 = vcvt.s32.f32 %v38
    %v40 = vld [vmem:[#allocation2] sm:$0xff]
    %v41 = vld [vmem:[#allocation2 + $0x8] sm:$0xff]
    %v42 = vld [vmem:[#allocation2 + $0x10] sm:$0xff]
    %v43 = vld [vmem:[#allocation2 + $0x18] sm:$0xff]
    %v44 = vld [vmem:[%s1] sm:$0xff]
    %vm45 = vcmask 261120
    %v47 = vsel %vm45, %v39, 0
    %49 = vmatpush.msra.mxu0 0.0
    %50 = vmatpush.msra.mxu0 0.0
    %51 = vmatpush.msra.mxu0 0.0
    %52 = vmatpush.msra.mxu0 0.0
    %53 = vmatpush.msra.mxu0 0.0
    %54 = vmatpush.msra.mxu0 0.0
    %55 = vmatpush.msra.mxu0 0.0
    %56 = vmatpush.msra.mxu0 0.0
    %57 = vmatpush.msra.mxu0 0.0
    %58 = vmatpush.msra.mxu0 0.0
    %59 = vmatpush.msra.mxu0 0.0
    %60 = vmatpush.msra.mxu0 0.0
    %61 = vmatpush.msra.mxu0 %v43
    %62 = vmatpush.msra.mxu0 %v42
    %63 = vmatpush.msra.mxu0 %v41
    %64 = vmatpush.msra.mxu0 %v40
    %65 = vmatmul.f32.gmra.mxu0 %v47
    %v66 = vpop.f32.mrf.mxu0
    %v67 = vadd.f32 %v44, %v66
    %68 = vdwg.mxu0
    %69 = vst [vmem:[#allocation5] sm:$0xff] %v67
    // Predicated region
    $region18: #{tpu_custom_call.1} parent=1 // pred_check
      _
    $region19: #{tpu_custom_call.1} parent=1 // pred_check_branch
      %71 = sbr.rel (0) target = $region21
    $region20: #{tpu_custom_call.1} parent=1 // pred_region
      %73 = vsyncadd [#allocation4], 0
      %s75 = sshll.u32 [#allocation5], 4
      %s76 = int_to_ptr.vmem [resolvable:$true] %s75
      %s77 = sshll.u32 %s3, 4
      %s78 = int_to_ptr.hbm [resolvable:$true] %s77
      %80 = dma.vmem_to_hbm [thread:$0]  %s76, 128, %s78, [#allocation4]
    $region21: #{tpu_custom_call.1} parent=1 // pred_fallthru
      _
    // Predicated region
    $region22: #{tpu_custom_call.1} parent=1 // pred_check
      _
    $region23: #{tpu_custom_call.1} parent=1 // pred_check_branch
      %82 = sbr.rel (0) target = $region25
    $region24: #{tpu_custom_call.1} parent=1 // pred_region
      %84 = dma.done [#allocation4], 128
    $region25: #{tpu_custom_call.1} parent=1 // pred_fallthru
      _
    %85 = vsyncpa [#allocation3], 1
    %86 = vsyncpa [#allocation4], 1

// kernel: tpu_custom_call.1
$region0: #{tpu_custom_call.1}
  #allocation0 [shape = 'u32[]', space=smem, size = 0x4, offset = 0x4, fixed_abs, tag = 'smem constant byte address 0x4 - core index']
  #allocation1 [shape = 'u32[72,128]{1,0:T(1,128)}', space=vmem, size = 0x9000, scoped, tag = 'internal scratch']
  %s0 = inlined_call_operand.vmem [shape: s32[8,1], index: 0, kind: input, shape index: {}]
  %s1 = inlined_call_operand.vmem [shape: f32[8,128], index: 1, kind: input, shape index: {}]
  %s2 = inlined_call_operand.hbm [shape: f32[32,128], index: 2, kind: input, shape index: {}]
  %s3 = inlined_call_operand.hbm [shape: f32[8,128], index: 3, kind: output, shape index: {}]
  %s4 = sld [smem:[#allocation0]]
  $region26: #{tpu_custom_call.1} parent=0
    _
  %s6 = ssub.s32 1, %s4
  %s7 = scalar_select 0, %s6, %s4
  $region1: #{tpu_custom_call.1} parent=0
    #allocation2 [shape = 'u8[16384]{0}', space=vmem, size = 0x4000, scoped, tag = 'input window, operand 2, single buffered']
    #allocation3 [shape = 's32[1]{0}', space=sflag, size = 0x4, scoped, tag = 'scoped memory for tpu_custom_call.1']
    #allocation4 [shape = 's32[1]{0}', space=sflag, size = 0x4, scoped, tag = 'scoped memory for tpu_custom_call.1']
    #allocation5 [shape = 'u8[4096]{0}', space=vmem, size = 0x1000, scoped, tag = 'output window, operand 0, single buffered']
    %8 = vsyncpa [#allocation3], 0
    %9 = vsyncpa [#allocation4], 0
    // Predicated region
    $region2: #{tpu_custom_call.1} parent=1 // pred_check
      _
    $region3: #{tpu_custom_call.1} parent=1 // pred_check_branch
      %11 = sbr.rel (0) target = $region5
    $region4: #{tpu_custom_call.1} parent=1 // pred_region
      _
    $region5: #{tpu_custom_call.1} parent=1 // pred_fallthru
      _
    // Predicated region
    $region6: #{tpu_custom_call.1} parent=1 // pred_check
      _
    $region7: #{tpu_custom_call.1} parent=1 // pred_check_branch
      %13 = sbr.rel (0) target = $region9
    $region8: #{tpu_custom_call.1} parent=1 // pred_region
      _
    $region9: #{tpu_custom_call.1} parent=1 // pred_fallthru
      _
    // Predicated region
    $region10: #{tpu_custom_call.1} parent=1 // pred_check
      _
    $region11: #{tpu_custom_call.1} parent=1 // pred_check_branch
      %15 = sbr.rel (0) target = $region13
    $region12: #{tpu_custom_call.1} parent=1 // pred_region
      %17 = vsyncadd [#allocation3], 0
      %s18 = sshll.u32 %s2, 4
      %s19 = int_to_ptr.hbm [resolvable:$true] %s18
      %s20 = sshll.u32 [#allocation2], 4
      %s21 = int_to_ptr.vmem [resolvable:$true] %s20
      %26 = dma.hbm_to_vmem [thread:$0]  %s19, 512, %s21, [#allocation3], 128, 128, 8
    $region13: #{tpu_custom_call.1} parent=1 // pred_fallthru
      _
    // Predicated region
    $region14: #{tpu_custom_call.1} parent=1 // pred_check
      _
    $region15: #{tpu_custom_call.1} parent=1 // pred_check_branch
      %28 = sbr.rel (0) target = $region17
    $region16: #{tpu_custom_call.1} parent=1 // pred_region
      %30 = dma.done [#allocation3], 512
    $region17: #{tpu_custom_call.1} parent=1 // pred_fallthru
      _
    %v31 = vld [vmem:[%s0] sm:$0xff]
    %v32 = vlaneseq
    %v33 = vand.u32 %v32, 127
    %34 = vset.pattern.permute.xlu0 0
    %35 = vperm.xlu0 %34, %v31
    %v36 = vpop.permute.xlu0 %35
    %vm37 = vcmp.eq.s32.totalorder %v33, %v36
    %v38 = vsel %vm37, 1, 0
    %v39 = vcvt.s32.f32 %v38
    %v40 = vld [vmem:[#allocation2] sm:$0xff]
    %v41 = vld [vmem:[#allocation2 + $0x8] sm:$0xff]
    %v42 = vld [vmem:[#allocation2 + $0x10] sm:$0xff]
    %v43 = vld [vmem:[#allocation2 + $0x18] sm:$0xff]
    %v44 = vld [vmem:[%s1] sm:$0xff]
    %vm45 = vcmask 261120
    %v47 = vsel %vm45, %v39, 0
    %49 = vmatpush.msra.mxu0 0.0
    %50 = vmatpush.msra.mxu0 0.0
    %51 = vmatpush.msra.mxu0 0.0
    %52 = vmatpush.msra.mxu0 0.0
    %53 = vmatpush.msra.mxu0 0.0
    %54 = vmatpush.msra.mxu0 0.0
    %55 = vmatpush.msra.mxu0 0.0
    %56 = vmatpush.msra.mxu0 0.0
    %57 = vmatpush.msra.mxu0 0.0
    %58 = vmatpush.msra.mxu0 0.0
    %59 = vmatpush.msra.mxu0 0.0
    %60 = vmatpush.msra.mxu0 0.0
    %61 = vmatpush.msra.mxu0 %v43
    %62 = vmatpush.msra.mxu0 %v42
    %63 = vmatpush.msra.mxu0 %v41
    %64 = vmatpush.msra.mxu0 %v40
    %65 = vmatmul.f32.gmra.mxu0 %v47
    %v66 = vpop.f32.mrf.mxu0
    %v67 = vadd.f32 %v44, %v66
    %68 = vdwg.mxu0
    %69 = vst [vmem:[#allocation5] sm:$0xff] %v67
    // Predicated region
    $region18: #{tpu_custom_call.1} parent=1 // pred_check
      _
    $region19: #{tpu_custom_call.1} parent=1 // pred_check_branch
      %71 = sbr.rel (0) target = $region21
    $region20: #{tpu_custom_call.1} parent=1 // pred_region
      %73 = vsyncadd [#allocation4], 0
      %s75 = sshll.u32 [#allocation5], 4
      %s76 = int_to_ptr.vmem [resolvable:$true] %s75
      %s77 = sshll.u32 %s3, 4
      %s78 = int_to_ptr.hbm [resolvable:$true] %s77
      %80 = dma.vmem_to_hbm [thread:$0]  %s76, 128, %s78, [#allocation4]
    $region21: #{tpu_custom_call.1} parent=1 // pred_fallthru
      _
    // Predicated region
    $region22: #{tpu_custom_call.1} parent=1 // pred_check
      _
    $region23: #{tpu_custom_call.1} parent=1 // pred_check_branch
      %82 = sbr.rel (0) target = $region25
    $region24: #{tpu_custom_call.1} parent=1 // pred_region
      %84 = dma.done [#allocation4], 128
    $region25: #{tpu_custom_call.1} parent=1 // pred_fallthru
      _
    %85 = vsyncpa [#allocation3], 1
    %86 = vsyncpa [#allocation4], 1

</llo_original>
